<compile_context>
chip_gen: v7x
topology: tpu7x:2x2x1
jax: 0.10.0
libtpu: 0.0.40
codegen_flags: <defaults>
</compile_context>

<pallas_src>
import functools
import math

import jax
import jax.numpy as jnp
from jax.experimental import pallas as pl
from jax.experimental.pallas import tpu as pltpu

D_MODEL = 32
DROPOUT_P = 0.1
MAX_LEN = 64   # module default is 5000; small synthetic table for the demo


def build_pe_table(d_model: int, max_len: int) -> jnp.ndarray:
    """Sinusoidal positional-encoding table [max_len, d_model] (buffer setup, plain JAX)."""
    assert d_model % 2 == 0, "build_pe_table assumes even d_model"
    position = jnp.arange(max_len, dtype=jnp.float32)[:, None]                  # [L, 1]
    div_term = jnp.exp(
        jnp.arange(0, d_model, 2, dtype=jnp.float32) * (-math.log(10000.0) / d_model)
    )                                                                           # [D/2]
    angles = position * div_term                                                # [L, D/2]
    pe = jnp.zeros((max_len, d_model), dtype=jnp.float32)
    pe = pe.at[:, 0::2].set(jnp.sin(angles))
    pe = pe.at[:, 1::2].set(jnp.cos(angles))
    return pe


def _pe_add_dropout_kernel(x_ref, pe_ref, bits_ref, o_ref, *, threshold, scale):
    # x_ref: [TS, B, L]   pe_ref: [TS, 1, L]   bits_ref: uint32 [TS, B, L]
    y = x_ref[...] + pe_ref[...]                        # broadcast add over batch (sublane axis)
    keep = bits_ref[...] >= jnp.uint32(threshold)       # P(keep) = 1 - p, integer threshold
    # fold the 1/(1-p) scale into the select: add + cmp + select + mul per element
    o_ref[...] = (y * jnp.where(keep, jnp.float32(scale), jnp.float32(0.0))).astype(o_ref.dtype)


def _pe_add_kernel(x_ref, pe_ref, o_ref):
    # eval-mode path (no dropout): just the positional add
    o_ref[...] = (x_ref[...] + pe_ref[...]).astype(o_ref.dtype)


def positional_encoding(x, pe_table, key, *, dropout_p=DROPOUT_P, training=True):
    """x: [seq_len, batch, d_model] float32. Returns dropout(x + pe[:seq_len])."""
    S, B, D = x.shape
    orig_dtype = x.dtype

    # --- lane-dense regrouping: pack G consecutive seq positions into the lane axis ---
    if D < 128 and 128 % D == 0:
        G = 128 // D
    else:
        G = 1
    L = G * D
    S_pad = ((S + G - 1) // G) * G
    pe_s = pe_table[:S].astype(orig_dtype)                       # [S, D]
    if S_pad != S:
        x = jnp.pad(x, ((0, S_pad - S), (0, 0), (0, 0)))
        pe_s = jnp.pad(pe_s, ((0, S_pad - S), (0, 0)))
    rows = S_pad // G

    x2 = x.reshape(rows, G, B, D).transpose(0, 2, 1, 3).reshape(rows, B, L)   # [rows, B, L]
    pe2 = pe_s.reshape(rows, 1, L)                                            # [rows, 1, L]

    # --- row tiling: largest tile whose double-buffered working set stays well inside VMEM ---
    per_row_bytes = (3 * B + 1) * L * 4                # x + bits + out (xB) + pe, f32/u32
    vmem_budget = 12 * 1024 * 1024                     # conservative for v5e/v6e/v7x scoped VMEM
    TS = max(1, min(rows, vmem_budget // (2 * per_row_bytes)))
    n_tiles = pl.cdiv(rows, TS)
    rows_pad = n_tiles * TS
    if rows_pad != rows:
        x2 = jnp.pad(x2, ((0, rows_pad - rows), (0, 0), (0, 0)))
        pe2 = jnp.pad(pe2, ((0, rows_pad - rows), (0, 0), (0, 0)))

    compiler_params = pltpu.CompilerParams(
        dimension_semantics=("parallel",),             # blocks independent; lets v7x use both TCs
        vmem_limit_bytes=32 * 1024 * 1024,
    )

    if training and dropout_p > 0.0:
        threshold = min(int(round(dropout_p * (1 << 32))), (1 << 32) - 1)
        scale = 1.0 / (1.0 - dropout_p)
        bits = jax.random.bits(key, (rows_pad, B, L), dtype=jnp.uint32)
        kernel = functools.partial(_pe_add_dropout_kernel, threshold=threshold, scale=scale)
        out2 = pl.pallas_call(
            kernel,
            out_shape=jax.ShapeDtypeStruct((rows_pad, B, L), orig_dtype),
            grid=(n_tiles,),
            in_specs=[
                pl.BlockSpec((TS, B, L), lambda i: (i, 0, 0)),
                pl.BlockSpec((TS, 1, L), lambda i: (i, 0, 0)),
                pl.BlockSpec((TS, B, L), lambda i: (i, 0, 0)),
            ],
            out_specs=pl.BlockSpec((TS, B, L), lambda i: (i, 0, 0)),
            compiler_params=compiler_params,
        )(x2, pe2, bits)
    else:
        out2 = pl.pallas_call(
            _pe_add_kernel,
            out_shape=jax.ShapeDtypeStruct((rows_pad, B, L), orig_dtype),
            grid=(n_tiles,),
            in_specs=[
                pl.BlockSpec((TS, B, L), lambda i: (i, 0, 0)),
                pl.BlockSpec((TS, 1, L), lambda i: (i, 0, 0)),
            ],
            out_specs=pl.BlockSpec((TS, B, L), lambda i: (i, 0, 0)),
            compiler_params=compiler_params,
        )(x2, pe2)

    # --- undo the lane-dense regrouping (layout plumbing only) ---
    out = (
        out2[:rows]
        .reshape(rows, B, G, D)
        .transpose(0, 2, 1, 3)
        .reshape(S_pad, B, D)[:S]
    )
    return out


if __name__ == "__main__":
    SEQ, BATCH = 8, 2

    key = jax.random.PRNGKey(0)
    kx, kdrop = jax.random.split(key)
    x = jax.random.normal(kx, (SEQ, BATCH, D_MODEL), dtype=jnp.float32)
    pe_table = build_pe_table(D_MODEL, MAX_LEN)

    # training-mode forward (dropout applied), matching the torch module's forward
    out = jax.block_until_ready(positional_encoding(x, pe_table, kdrop))
    assert out.shape == (SEQ, BATCH, D_MODEL)
    assert out.dtype == jnp.float32

    # sanity: eval path (no dropout) must equal x + pe
    out_eval = jax.block_until_ready(
        positional_encoding(x, pe_table, kdrop, training=False)
    )
    ref = x + pe_table[:SEQ][:, None, :]
    assert jnp.allclose(out_eval, ref, atol=1e-6)

    # sanity: training outputs are either 0 (dropped) or (x+pe)/(1-p) (kept)
    ref_scaled = ref / (1.0 - DROPOUT_P)
    assert jnp.allclose(jnp.where(out != 0, out, ref_scaled), ref_scaled, atol=1e-5)

    print("KERNEL_OK")
</pallas_src>

<mosaic_0001>
module attributes {stable_mosaic.version = 11 : i64} {
  func.func @_pe_add_dropout_kernel(%arg0: i32, %arg1: memref<2x2x128xf32, #tpu.memory_space<vmem>>, %arg2: memref<2x1x128xf32, #tpu.memory_space<vmem>>, %arg3: memref<2x2x128xi32, #tpu.memory_space<vmem>>, %arg4: memref<2x2x128xf32, #tpu.memory_space<vmem>>) attributes {dimension_semantics = [#tpu.dimension_semantics<parallel>], iteration_bounds = array<i64: 1>, scalar_prefetch = 0 : i64, scratch_operands = 0 : i64, tpu.core_type = #tpu.core_type<tc>, window_params = [{transform_indices = @transform_0, window_bounds = array<i64: 2, 2, 128>}, {transform_indices = @transform_1, window_bounds = array<i64: 2, 1, 128>}, {transform_indices = @transform_2, window_bounds = array<i64: 2, 2, 128>}, {transform_indices = @transform_3, window_bounds = array<i64: 2, 2, 128>}]} {
    %c0 = arith.constant 0 : index
    %c0_0 = arith.constant 0 : index
    %c0_1 = arith.constant 0 : index
    %0 = vector.load %arg1[%c0, %c0_0, %c0_1] : memref<2x2x128xf32, #tpu.memory_space<vmem>>, vector<2x2x128xf32>
    %c0_2 = arith.constant 0 : index
    %c0_3 = arith.constant 0 : index
    %c0_4 = arith.constant 0 : index
    %1 = vector.load %arg2[%c0_2, %c0_3, %c0_4] : memref<2x1x128xf32, #tpu.memory_space<vmem>>, vector<2x1x128xf32>
    %2 = vector.broadcast %1 : vector<2x1x128xf32> to vector<2x2x128xf32>
    %3 = arith.addf %0, %2 : vector<2x2x128xf32>
    %c0_5 = arith.constant 0 : index
    %c0_6 = arith.constant 0 : index
    %c0_7 = arith.constant 0 : index
    %4 = vector.load %arg3[%c0_5, %c0_6, %c0_7] : memref<2x2x128xi32, #tpu.memory_space<vmem>>, vector<2x2x128xi32>
    %c429496730_i32 = arith.constant 429496730 : i32
    %5 = vector.broadcast %c429496730_i32 : i32 to vector<2x2x128xi32>
    %6 = arith.cmpi uge, %4, %5 : vector<2x2x128xi32>
    %cst = arith.constant 1.11111116 : f32
    %cst_8 = arith.constant 0.000000e+00 : f32
    %7 = vector.broadcast %cst : f32 to vector<2x2x128xf32>
    %8 = vector.broadcast %cst_8 : f32 to vector<2x2x128xf32>
    %9 = arith.select %6, %7, %8 : vector<2x2x128xi1>, vector<2x2x128xf32>
    %10 = arith.mulf %3, %9 : vector<2x2x128xf32>
    %c0_9 = arith.constant 0 : index
    %c0_10 = arith.constant 0 : index
    %c0_11 = arith.constant 0 : index
    %11 = vector.load %arg4[%c0_9, %c0_10, %c0_11] : memref<2x2x128xf32, #tpu.memory_space<vmem>>, vector<2x2x128xf32>
    tpu.vector_store %arg4[%c0_9, %c0_10, %c0_11], %10 {strides = array<i32>} : memref<2x2x128xf32, #tpu.memory_space<vmem>>, vector<2x2x128xf32>,
    return
  }
  func.func @transform_0(%arg0: i32) -> (i32, i32, i32) {
    %c0_i32 = arith.constant 0 : i32
    %c0_i32_0 = arith.constant 0 : i32
    %c0_i32_1 = arith.constant 0 : i32
    return %arg0, %c0_i32, %c0_i32_0 : i32, i32, i32
  }
  func.func @transform_1(%arg0: i32) -> (i32, i32, i32) {
    %c0_i32 = arith.constant 0 : i32
    %c0_i32_0 = arith.constant 0 : i32
    %c0_i32_1 = arith.constant 0 : i32
    return %arg0, %c0_i32, %c0_i32_0 : i32, i32, i32
  }
  func.func @transform_2(%arg0: i32) -> (i32, i32, i32) {
    %c0_i32 = arith.constant 0 : i32
    %c0_i32_0 = arith.constant 0 : i32
    %c0_i32_1 = arith.constant 0 : i32
    return %arg0, %c0_i32, %c0_i32_0 : i32, i32, i32
  }
  func.func @transform_3(%arg0: i32) -> (i32, i32, i32) {
    %c0_i32 = arith.constant 0 : i32
    %c0_i32_0 = arith.constant 0 : i32
    %c0_i32_1 = arith.constant 0 : i32
    return %arg0, %c0_i32, %c0_i32_0 : i32, i32, i32
  }
}

</mosaic_0001>

<llo_original>
// kernel: tpu_custom_call.1
$region0: #{tpu_custom_call.1}
  #allocation0 [shape = 'u32[]', space=smem, size = 0x4, offset = 0x4, fixed_abs, tag = 'smem constant byte address 0x4 - core index']
  #allocation1 [shape = 'u32[144,128]{1,0:T(1,128)}', space=vmem, size = 0x12000, scoped, tag = 'internal scratch']
  %s0 = inlined_call_operand.hbm [shape: f32[2,2,128], index: 0, kind: input, shape index: {}]
  %s1 = inlined_call_operand.vmem [shape: f32[2,1,128], index: 1, kind: input, shape index: {}]
  %s2 = inlined_call_operand.vmem [shape: u32[2,2,128], index: 2, kind: input, shape index: {}]
  %s3 = inlined_call_operand.hbm [shape: f32[2,2,128], index: 3, kind: output, shape index: {}]
  %s4 = sld [smem:[#allocation0]]
  $region26: #{tpu_custom_call.1} parent=0
    _
  %s6 = ssub.s32 1, %s4
  %s7 = scalar_select 0, %s6, %s4
  $region1: #{tpu_custom_call.1} parent=0
    #allocation2 [shape = 'u8[2048]{0}', space=vmem, size = 0x800, scoped, tag = 'input window, operand 0, single buffered']
    #allocation3 [shape = 's32[1]{0}', space=sflag, size = 0x4, scoped, tag = 'scoped memory for tpu_custom_call.1']
    #allocation4 [shape = 's32[1]{0}', space=sflag, size = 0x4, scoped, tag = 'scoped memory for tpu_custom_call.1']
    #allocation5 [shape = 'u8[2048]{0}', space=vmem, size = 0x800, scoped, tag = 'output window, operand 0, single buffered']
    %8 = vsyncpa [#allocation3], 0
    %9 = vsyncpa [#allocation4], 0
    // Predicated region
    $region2: #{tpu_custom_call.1} parent=1 // pred_check
      _
    $region3: #{tpu_custom_call.1} parent=1 // pred_check_branch
      %11 = sbr.rel (0) target = $region5
    $region4: #{tpu_custom_call.1} parent=1 // pred_region
      %s13 = ssub.s32 64, 64
      %14 = vsyncadd [#allocation3], %s13
      %s15 = sshll.u32 [#allocation2], 4
      %s16 = int_to_ptr.vmem [resolvable:$true] %s15
      %21 = dma.hbm_to_vmem [thread:$0]  %s0, 64, %s16, [#allocation3], 32, 32, 2
    $region5: #{tpu_custom_call.1} parent=1 // pred_fallthru
      _
    // Predicated region
    $region6: #{tpu_custom_call.1} parent=1 // pred_check
      _
    $region7: #{tpu_custom_call.1} parent=1 // pred_check_branch
      %23 = sbr.rel (0) target = $region9
    $region8: #{tpu_custom_call.1} parent=1 // pred_region
      _
    $region9: #{tpu_custom_call.1} parent=1 // pred_fallthru
      _
    // Predicated region
    $region10: #{tpu_custom_call.1} parent=1 // pred_check
      _
    $region11: #{tpu_custom_call.1} parent=1 // pred_check_branch
      %25 = sbr.rel (0) target = $region13
    $region12: #{tpu_custom_call.1} parent=1 // pred_region
      _
    $region13: #{tpu_custom_call.1} parent=1 // pred_fallthru
      _
    // Predicated region
    $region14: #{tpu_custom_call.1} parent=1 // pred_check
      _
    $region15: #{tpu_custom_call.1} parent=1 // pred_check_branch
      %27 = sbr.rel (0) target = $region17
    $region16: #{tpu_custom_call.1} parent=1 // pred_region
      %28 = dma.done [#allocation3], 64
    $region17: #{tpu_custom_call.1} parent=1 // pred_fallthru
      _
    %v29 = vld [vmem:[#allocation2] sm:$0x3]
    %v30 = vld [vmem:[#allocation2 + $0x2] sm:$0x3]
    %v31 = vld [vmem:[%s1] sm:$0x1]
    %v32 = vld [vmem:[%s1 + $0x1] sm:$0x1]
    %v35 = vlaneseq
    %v36 = vshrl.u32 %v35, 7
    %v37 = vsub.s32 0, %v36
    %v38 = vrot.slane %v31, %v37
    %v39 = vlaneseq
    %v40 = vshrl.u32 %v39, 7
    %v41 = vsub.s32 0, %v40
    %v42 = vrot.slane %v32, %v41
    %v45 = vadd.f32 %v29, %v38
    %v46 = vadd.f32 %v30, %v42
    %v47 = vld [vmem:[%s2] sm:$0x3]
    %v48 = vld [vmem:[%s2 + $0x2] sm:$0x3]
    %vm49 = vcmp.ge.u32.totalorder %v47, 429496730
    %vm50 = vcmp.ge.u32.totalorder %v48, 429496730
    %v51 = vsel %vm49, 1.1111112, 0.0
    %v52 = vsel %vm50, 1.1111112, 0.0
    %v53 = vmul.f32 %v45, %v51
    %v54 = vmul.f32 %v46, %v52
    %55 = vst [vmem:[#allocation5] sm:$0x3] %v53
    %56 = vst [vmem:[#allocation5 + $0x2] sm:$0x3] %v54
    // Predicated region
    $region18: #{tpu_custom_call.1} parent=1 // pred_check
      _
    $region19: #{tpu_custom_call.1} parent=1 // pred_check_branch
      %58 = sbr.rel (0) target = $region21
    $region20: #{tpu_custom_call.1} parent=1 // pred_region
      %s60 = ssub.s32 64, 64
      %61 = vsyncadd [#allocation4], %s60
      %s62 = sshll.u32 [#allocation5], 4
      %s63 = int_to_ptr.vmem [resolvable:$true] %s62
      %68 = dma.vmem_to_hbm [thread:$0]  %s63, 64, %s3, [#allocation4], 32, 32, 2
    $region21: #{tpu_custom_call.1} parent=1 // pred_fallthru
      _
    // Predicated region
    $region22: #{tpu_custom_call.1} parent=1 // pred_check
      _
    $region23: #{tpu_custom_call.1} parent=1 // pred_check_branch
      %70 = sbr.rel (0) target = $region25
    $region24: #{tpu_custom_call.1} parent=1 // pred_region
      %71 = dma.done [#allocation4], 64
    $region25: #{tpu_custom_call.1} parent=1 // pred_fallthru
      _
    %72 = vsyncpa [#allocation3], 1
    %73 = vsyncpa [#allocation4], 1

</llo_original>
